<compile_context>
chip_gen: v7x
topology: tpu7x:2x2x1
jax: 0.10.0
libtpu: 0.0.40
codegen_flags: <defaults>
</compile_context>

<pallas_src>
import functools

import jax
import jax.numpy as jnp
from jax import lax
from jax.experimental import pallas as pl
from jax.experimental.pallas import tpu as pltpu


def _activation(name, x):
    if name == "relu":
        return jnp.maximum(x, 0.0)
    elif name == "tanh":
        return jnp.tanh(x)
    elif name == "leaky_relu":
        # PyTorch nn.LeakyReLU default negative_slope = 0.01
        return jnp.where(x >= 0, x, 0.01 * x)
    else:
        raise ValueError(f"unknown activation {name}")


def multichannel_kernel(
    xl_ref, xg_ref,           # (tm, D) streamed batch tiles (compute dtype)
    wloc_ref, bloc_ref,       # fused [local ; siamese] weights/bias  (2H, D), (2H, 1)
    wglb_ref, bglb_ref,       # fused [global ; siamese] weights/bias (2H, D), (2H, 1)
    wo_ref, bo_ref,           # output layer                          (3H, 1), (1, 1)
    out_ref,                  # (1, tm) lane-dense output row
    *, activation, hidden_dim,
):
    H = hidden_dim
    xl = xl_ref[...]          # (tm, D)
    xg = xg_ref[...]          # (tm, D)

    # (2H, D) . (tm, D)^T -> (2H, tm): batch on lanes, f32 accumulation on the MXU.
    dn = (((1,), (1,)), ((), ()))
    hl = _activation(
        activation,
        lax.dot_general(wloc_ref[...], xl, dn, preferred_element_type=jnp.float32)
        + bloc_ref[...])
    hg = _activation(
        activation,
        lax.dot_general(wglb_ref[...], xg, dn, preferred_element_type=jnp.float32)
        + bglb_ref[...])

    # Sublane slices (H is a multiple of 8 -> free vreg stacking, no lane shuffles).
    h1, h3a = hl[:H, :], hl[H:, :]     # local channel, siamese(local)
    h2, h3b = hg[:H, :], hg[H:, :]     # global channel, siamese(global)
    d = jnp.abs(h3a - h3b)             # (H, tm)

    # Output layer on the VPU/XLU: sublane concat (free) then multiply by the
    # (3H, 1) output weights and reduce over sublanes -> lane-dense (1, tm).
    c = jnp.concatenate([h1, h2, d], axis=0)                       # (3H, tm)
    e = jnp.sum(c * wo_ref[...], axis=0, keepdims=True) + bo_ref[...]
    out_ref[...] = jax.nn.sigmoid(e)


def _choose_tile(B, D, H, in_bytes, block_batch):
    """Pick the batch tile (multiple of 128 lanes) from a VMEM budget."""
    LANE = 128

    def vmem_need(t):
        x_buf = 2 * 2 * t * D * in_bytes          # x_local/x_global, double-buffered
        w_buf = 2 * 2 * (2 * H) * D * in_bytes    # resident fused weight blocks
        small = 2 * (4 * H + 3 * H + 2) * 4       # biases, wo, bo (f32)
        o_buf = 2 * t * 4                         # (1, tm) f32 output, double-buffered
        return x_buf + w_buf + small + o_buf

    if B <= LANE:
        tm = B                                    # block dims == array dims (allowed)
    else:
        bb = max(LANE, (block_batch // LANE) * LANE)
        tm = min(bb, (B // LANE) * LANE)
        # v7x megacore: keep >= 2 grid steps so the "parallel" batch axis can shard
        # across both TensorCores (costs at most one extra ~0.35us step on 1-TC chips).
        if B >= 2 * LANE:
            tm = min(tm, max(LANE, ((B // 2) // LANE) * LANE))
        # Conservative budget that fits v7x's 64 MiB physical VMEM (v5e/v6e have 128).
        budget = 40 * 1024 * 1024
        while tm > LANE and vmem_need(tm) > budget:
            tm -= LANE

    grid_n = pl.cdiv(B, tm)
    vmem_limit = int(min(64 * 1024 * 1024,
                         max(32 * 1024 * 1024, vmem_need(tm) * 3 // 2)))
    return tm, grid_n, vmem_limit


def prepare_params(params, compute_dtype=jnp.bfloat16):
    """One-off fusion/casting of the weights (hoisted out of the per-call path).

    params are in PyTorch nn.Linear layout: weight (out_features, in_features),
    bias (out_features,).
    """
    wl, bl, wg, bg, ws, bs, wo, bo = params
    W_loc = jnp.concatenate([wl, ws], axis=0).astype(compute_dtype)          # (2H, D)
    b_loc = jnp.concatenate([bl, bs], axis=0).reshape(-1, 1).astype(jnp.float32)
    W_glb = jnp.concatenate([wg, ws], axis=0).astype(compute_dtype)          # (2H, D)
    b_glb = jnp.concatenate([bg, bs], axis=0).reshape(-1, 1).astype(jnp.float32)
    wo_col = wo.reshape(-1, 1).astype(jnp.float32)                           # (3H, 1)
    bo_s = bo.reshape(1, 1).astype(jnp.float32)                              # (1, 1)
    return (W_loc, b_loc, W_glb, b_glb, wo_col, bo_s)


def multichannel_forward(x_local, x_global, fused_params, activation="relu",
                         block_batch=2048, compute_dtype=jnp.bfloat16):
    # The siamese Linear is applied to BOTH inputs -> feature dims must match.
    assert x_local.shape == x_global.shape, (
        "siamese channel requires x_local and x_global to share shape")

    B, D = x_local.shape
    W_loc, b_loc, W_glb, b_glb, wo_col, bo_s = fused_params
    H = W_loc.shape[0] // 2
    assert W_loc.shape[1] == D and wo_col.shape[0] == 3 * H

    # Stream inputs in the compute dtype (ideally the caller already keeps them in
    # this dtype; otherwise this cast is a single upfront copy).
    xl = x_local.astype(compute_dtype)
    xg = x_global.astype(compute_dtype)

    in_bytes = jnp.dtype(compute_dtype).itemsize
    tm, grid_n, vmem_limit = _choose_tile(B, D, H, in_bytes, block_batch)

    kernel = functools.partial(multichannel_kernel,
                               activation=activation, hidden_dim=H)

    # Batch-tiled inputs; weights/biases stay VMEM-resident (constant index_map).
    resident = lambda a: pl.BlockSpec(a.shape, lambda i: (0,) * a.ndim)

    out = pl.pallas_call(
        kernel,
        out_shape=jax.ShapeDtypeStruct((1, B), jnp.float32),
        grid=(grid_n,),
        in_specs=[
            pl.BlockSpec((tm, D), lambda i: (i, 0)),   # x_local
            pl.BlockSpec((tm, D), lambda i: (i, 0)),   # x_global
            resident(W_loc), resident(b_loc),
            resident(W_glb), resident(b_glb),
            resident(wo_col), resident(bo_s),
        ],
        out_specs=pl.BlockSpec((1, tm), lambda i: (0, i)),   # lane-dense output row
        compiler_params=pltpu.CompilerParams(
            dimension_semantics=("parallel",),
            vmem_limit_bytes=vmem_limit),
    )(xl, xg, W_loc, b_loc, W_glb, b_glb, wo_col, bo_s)

    return out.reshape(B, 1)


def init_params(key, in_dim, hidden_dim):
    """Deterministic init mimicking nn.Linear defaults (uniform +-1/sqrt(fan_in)).
    Weights in PyTorch layout: (out_features, in_features); bias (out_features,)."""
    ks = jax.random.split(key, 8)

    def lin(kw, kb, fan_in, fan_out):
        bound = float(fan_in) ** -0.5
        w = jax.random.uniform(kw, (fan_out, fan_in), jnp.float32, -bound, bound)
        b = jax.random.uniform(kb, (fan_out,), jnp.float32, -bound, bound)
        return w, b

    wl, bl = lin(ks[0], ks[1], in_dim, hidden_dim)      # local_channel
    wg, bg = lin(ks[2], ks[3], in_dim, hidden_dim)      # global_channel
    ws, bs = lin(ks[4], ks[5], in_dim, hidden_dim)      # siamese_channel
    wo, bo = lin(ks[6], ks[7], 3 * hidden_dim, 1)       # out
    return (wl, bl, wg, bg, ws, bs, wo, bo)


def reference_forward(x_local, x_global, params, activation="relu",
                      compute_dtype=jnp.bfloat16):
    """Pure-JAX reference with the same bf16 rounding of x / W as the kernel."""
    wl, bl, wg, bg, ws, bs, wo, bo = params
    q = lambda a: a.astype(compute_dtype).astype(jnp.float32)
    xl, xg = q(x_local), q(x_global)
    act = lambda v: _activation(activation, v)
    h1 = act(xl @ q(wl).T + bl)
    h2 = act(xg @ q(wg).T + bg)
    h3a = act(xl @ q(ws).T + bs)
    h3b = act(xg @ q(ws).T + bs)
    d = jnp.abs(h3a - h3b)
    c = jnp.concatenate([h1, h2, d], axis=1)
    return jax.nn.sigmoid(c @ wo.T + bo)


if __name__ == "__main__":
    # Small shapes: batch=256 (2 lane-dense tiles of 128), feature dim=32, hidden=32.
    # (The PyTorch module applies the siamese Linear(local_dim[1], H) to BOTH
    #  inputs, so local_dim[1] == global_dim[1] is required; we use 32.)
    B, D, H = 256, 32, 32
    activation = "relu"

    key = jax.random.PRNGKey(0)
    k_xl, k_xg, k_p = jax.random.split(key, 3)
    x_local = jax.random.normal(k_xl, (B, D), jnp.float32)
    x_global = jax.random.normal(k_xg, (B, D), jnp.float32)
    params = init_params(k_p, D, H)
    fused = prepare_params(params, compute_dtype=jnp.bfloat16)

    y = multichannel_forward(x_local, x_global, fused, activation,
                             compute_dtype=jnp.bfloat16)
    y = jax.block_until_ready(y)

    y_ref = reference_forward(x_local, x_global, params, activation,
                              compute_dtype=jnp.bfloat16)
    assert y.shape == (B, 1)
    err = float(jnp.max(jnp.abs(y - y_ref)))
    assert err < 2e-3, f"mismatch vs reference: max abs err {err}"

    print("KERNEL_OK")
</pallas_src>

<mosaic_0001>
module attributes {stable_mosaic.version = 11 : i64} {
  func.func @multichannel_kernel(%arg0: i32, %arg1: memref<128x32xbf16, #tpu.memory_space<vmem>>, %arg2: memref<128x32xbf16, #tpu.memory_space<vmem>>, %arg3: memref<64x32xbf16, #tpu.memory_space<vmem>>, %arg4: memref<64x1xf32, #tpu.memory_space<vmem>>, %arg5: memref<64x32xbf16, #tpu.memory_space<vmem>>, %arg6: memref<64x1xf32, #tpu.memory_space<vmem>>, %arg7: memref<96x1xf32, #tpu.memory_space<vmem>>, %arg8: memref<1x1xf32, #tpu.memory_space<vmem>>, %arg9: memref<1x128xf32, #tpu.memory_space<vmem>>) attributes {dimension_semantics = [#tpu.dimension_semantics<parallel>], iteration_bounds = array<i64: 2>, scalar_prefetch = 0 : i64, scratch_operands = 0 : i64, tpu.core_type = #tpu.core_type<tc>, window_params = [{transform_indices = @transform_0, window_bounds = array<i64: 128, 32>}, {transform_indices = @transform_1, window_bounds = array<i64: 128, 32>}, {pipeline_mode = #tpu.pipeline_mode<synchronous>, transform_indices = @transform_2, window_bounds = array<i64: 64, 32>}, {pipeline_mode = #tpu.pipeline_mode<synchronous>, transform_indices = @transform_3, window_bounds = array<i64: 64, 1>}, {pipeline_mode = #tpu.pipeline_mode<synchronous>, transform_indices = @transform_4, window_bounds = array<i64: 64, 32>}, {pipeline_mode = #tpu.pipeline_mode<synchronous>, transform_indices = @transform_5, window_bounds = array<i64: 64, 1>}, {pipeline_mode = #tpu.pipeline_mode<synchronous>, transform_indices = @transform_6, window_bounds = array<i64: 96, 1>}, {pipeline_mode = #tpu.pipeline_mode<synchronous>, transform_indices = @transform_7, window_bounds = array<i64: 1, 1>}, {transform_indices = @transform_8, window_bounds = array<i64: 1, 128>}]} {
    %c0 = arith.constant 0 : index
    %c0_0 = arith.constant 0 : index
    %0 = vector.load %arg1[%c0, %c0_0] : memref<128x32xbf16, #tpu.memory_space<vmem>>, vector<128x32xbf16>
    %c0_1 = arith.constant 0 : index
    %c0_2 = arith.constant 0 : index
    %1 = vector.load %arg2[%c0_1, %c0_2] : memref<128x32xbf16, #tpu.memory_space<vmem>>, vector<128x32xbf16>
    %c0_3 = arith.constant 0 : index
    %c0_4 = arith.constant 0 : index
    %2 = vector.load %arg3[%c0_3, %c0_4] : memref<64x32xbf16, #tpu.memory_space<vmem>>, vector<64x32xbf16>
    %cst = arith.constant dense<0.000000e+00> : vector<64x128xf32>
    %3 = tpu.matmul %2, %0, %cst {dimension_numbers = #tpu.dot_dimension_numbers<[1], [1], [0], [0], [0, 0, 1, 0], [], []>} : vector<64x32xbf16>, vector<128x32xbf16>, vector<64x128xf32> -> vector<64x128xf32>
    %c0_5 = arith.constant 0 : index
    %c0_6 = arith.constant 0 : index
    %4 = vector.load %arg4[%c0_5, %c0_6] : memref<64x1xf32, #tpu.memory_space<vmem>>, vector<64x1xf32>
    %5 = vector.broadcast %4 : vector<64x1xf32> to vector<64x128xf32>
    %6 = arith.addf %3, %5 : vector<64x128xf32>
    %cst_7 = arith.constant 0.000000e+00 : f32
    %7 = vector.broadcast %cst_7 : f32 to vector<64x128xf32>
    %8 = arith.maximumf %6, %7 : vector<64x128xf32>
    %c0_8 = arith.constant 0 : index
    %c0_9 = arith.constant 0 : index
    %9 = vector.load %arg5[%c0_8, %c0_9] : memref<64x32xbf16, #tpu.memory_space<vmem>>, vector<64x32xbf16>
    %cst_10 = arith.constant dense<0.000000e+00> : vector<64x128xf32>
    %10 = tpu.matmul %9, %1, %cst_10 {dimension_numbers = #tpu.dot_dimension_numbers<[1], [1], [0], [0], [0, 0, 1, 0], [], []>} : vector<64x32xbf16>, vector<128x32xbf16>, vector<64x128xf32> -> vector<64x128xf32>
    %c0_11 = arith.constant 0 : index
    %c0_12 = arith.constant 0 : index
    %11 = vector.load %arg6[%c0_11, %c0_12] : memref<64x1xf32, #tpu.memory_space<vmem>>, vector<64x1xf32>
    %12 = vector.broadcast %11 : vector<64x1xf32> to vector<64x128xf32>
    %13 = arith.addf %10, %12 : vector<64x128xf32>
    %cst_13 = arith.constant 0.000000e+00 : f32
    %14 = vector.broadcast %cst_13 : f32 to vector<64x128xf32>
    %15 = arith.maximumf %13, %14 : vector<64x128xf32>
    %16 = vector.extract_strided_slice %8 {offsets = [0, 0], sizes = [32, 128], strides = [1, 1]} : vector<64x128xf32> to vector<32x128xf32>
    %17 = vector.extract_strided_slice %8 {offsets = [32, 0], sizes = [32, 128], strides = [1, 1]} : vector<64x128xf32> to vector<32x128xf32>
    %18 = vector.extract_strided_slice %15 {offsets = [0, 0], sizes = [32, 128], strides = [1, 1]} : vector<64x128xf32> to vector<32x128xf32>
    %19 = vector.extract_strided_slice %15 {offsets = [32, 0], sizes = [32, 128], strides = [1, 1]} : vector<64x128xf32> to vector<32x128xf32>
    %20 = arith.subf %17, %19 : vector<32x128xf32>
    %21 = math.absf %20 : vector<32x128xf32>
    %22 = tpu.concatenate %16, %18, %21 in 0 : vector<32x128xf32>, vector<32x128xf32>, vector<32x128xf32> -> vector<96x128xf32>
    %c0_14 = arith.constant 0 : index
    %c0_15 = arith.constant 0 : index
    %23 = vector.load %arg7[%c0_14, %c0_15] : memref<96x1xf32, #tpu.memory_space<vmem>>, vector<96x1xf32>
    %24 = vector.broadcast %23 : vector<96x1xf32> to vector<96x128xf32>
    %25 = arith.mulf %22, %24 : vector<96x128xf32>
    %cst_16 = arith.constant dense<0.000000e+00> : vector<128xf32>
    %26 = vector.multi_reduction <add>, %25, %cst_16 [0] : vector<96x128xf32> to vector<128xf32>
    %27 = vector.shape_cast %26 : vector<128xf32> to vector<1x128xf32>
    %c0_17 = arith.constant 0 : index
    %c0_18 = arith.constant 0 : index
    %28 = vector.load %arg8[%c0_17, %c0_18] : memref<1x1xf32, #tpu.memory_space<vmem>>, vector<1x1xf32>
    %29 = vector.broadcast %28 : vector<1x1xf32> to vector<1x128xf32>
    %30 = arith.addf %27, %29 : vector<1x128xf32>
    %31 = arith.negf %30 : vector<1x128xf32>
    %32 = math.exp %31 : vector<1x128xf32>
    %cst_19 = arith.constant 1.000000e+00 : f32
    %33 = vector.broadcast %cst_19 : f32 to vector<1x128xf32>
    %34 = arith.addf %33, %32 : vector<1x128xf32>
    %35 = arith.divf %33, %34 : vector<1x128xf32>
    %c0_20 = arith.constant 0 : index
    %c0_21 = arith.constant 0 : index
    %36 = vector.load %arg9[%c0_20, %c0_21] : memref<1x128xf32, #tpu.memory_space<vmem>>, vector<1x128xf32>
    tpu.vector_store %arg9[%c0_20, %c0_21], %35 {strides = array<i32>} : memref<1x128xf32, #tpu.memory_space<vmem>>, vector<1x128xf32>,
    return
  }
  func.func @transform_0(%arg0: i32) -> (i32, i32) {
    %c0_i32 = arith.constant 0 : i32
    %c0_i32_0 = arith.constant 0 : i32
    return %arg0, %c0_i32 : i32, i32
  }
  func.func @transform_1(%arg0: i32) -> (i32, i32) {
    %c0_i32 = arith.constant 0 : i32
    %c0_i32_0 = arith.constant 0 : i32
    return %arg0, %c0_i32 : i32, i32
  }
  func.func @transform_2(%arg0: i32) -> (i32, i32) {
    %c0_i32 = arith.constant 0 : i32
    %c0_i32_0 = arith.constant 0 : i32
    %c0_i32_1 = arith.constant 0 : i32
    return %c0_i32, %c0_i32_0 : i32, i32
  }
  func.func @transform_3(%arg0: i32) -> (i32, i32) {
    %c0_i32 = arith.constant 0 : i32
    %c0_i32_0 = arith.constant 0 : i32
    %c0_i32_1 = arith.constant 0 : i32
    return %c0_i32, %c0_i32_0 : i32, i32
  }
  func.func @transform_4(%arg0: i32) -> (i32, i32) {
    %c0_i32 = arith.constant 0 : i32
    %c0_i32_0 = arith.constant 0 : i32
    %c0_i32_1 = arith.constant 0 : i32
    return %c0_i32, %c0_i32_0 : i32, i32
  }
  func.func @transform_5(%arg0: i32) -> (i32, i32) {
    %c0_i32 = arith.constant 0 : i32
    %c0_i32_0 = arith.constant 0 : i32
    %c0_i32_1 = arith.constant 0 : i32
    return %c0_i32, %c0_i32_0 : i32, i32
  }
  func.func @transform_6(%arg0: i32) -> (i32, i32) {
    %c0_i32 = arith.constant 0 : i32
    %c0_i32_0 = arith.constant 0 : i32
    %c0_i32_1 = arith.constant 0 : i32
    return %c0_i32, %c0_i32_0 : i32, i32
  }
  func.func @transform_7(%arg0: i32) -> (i32, i32) {
    %c0_i32 = arith.constant 0 : i32
    %c0_i32_0 = arith.constant 0 : i32
    %c0_i32_1 = arith.constant 0 : i32
    return %c0_i32, %c0_i32_0 : i32, i32
  }
  func.func @transform_8(%arg0: i32) -> (i32, i32) {
    %c0_i32 = arith.constant 0 : i32
    %c0_i32_0 = arith.constant 0 : i32
    return %c0_i32, %arg0 : i32, i32
  }
}

</mosaic_0001>

<llo_original>
// kernel: tpu_custom_call.1
$region0: #{tpu_custom_call.1}
  #allocation0 [shape = 'u32[]', space=smem, size = 0x4, offset = 0x4, fixed_abs, tag = 'smem constant byte address 0x4 - core index']
  #allocation1 [shape = 'u32[144,128]{1,0:T(1,128)}', space=vmem, size = 0x12000, scoped, tag = 'internal scratch']
  #allocation2 [shape = 'f32[1,1]{1,0:T(1,128)S(1)}', space=vmem, size = 0x200, scoped, tag = 'scoped memory for tpu_custom_call.1']
  %s0 = inlined_call_operand.vmem [shape: bf16[256,32], index: 0, kind: input, shape index: {}]
  %s1 = inlined_call_operand.vmem [shape: bf16[256,32], index: 1, kind: input, shape index: {}]
  %s2 = inlined_call_operand.vmem [shape: bf16[64,32], index: 2, kind: input, shape index: {}]
  %s3 = inlined_call_operand.vmem [shape: f32[64,1], index: 3, kind: input, shape index: {}]
  %s4 = inlined_call_operand.vmem [shape: bf16[64,32], index: 4, kind: input, shape index: {}]
  %s5 = inlined_call_operand.vmem [shape: f32[64,1], index: 5, kind: input, shape index: {}]
  %s6 = inlined_call_operand.vmem [shape: f32[96,1], index: 6, kind: input, shape index: {}]
  %s7 = inlined_call_operand.<no memory space> [shape: f32[1,1], index: 7, kind: input, shape index: {}]
  %s8 = inlined_call_operand.hbm [shape: f32[1,256], index: 8, kind: output, shape index: {}]
  %s9 = sld [smem:[#allocation0]]
  $region65: #{tpu_custom_call.1} parent=0
    _
  %s11 = ssub.s32 1, %s9
  %s12 = scalar_select 0, %s11, %s9
  %v13 = vstv %s7
  %14 = vst [vmem:[#allocation2] sm:$0x1] %v13
  $region1: #{tpu_custom_call.1} parent=0
    #allocation3 [shape = 'u8[1024]{0}', space=vmem, size = 0x400, scoped, tag = 'output window, operand 0']
    #allocation4 [shape = 's32[2]{0}', space=sflag, size = 0x8, scoped, tag = 'scoped memory for tpu_custom_call.1']
    %15 = vsyncpa [#allocation4], 0
    %s16 = scalar_lea.sflag [#allocation4], 1
    %17 = vsyncpa %s16, 0
    loop: start=0, step=1, limit=4
    $region2: #{tpu_custom_call.1} parent=1 // loop_pre_header
      _
    $region3: #{tpu_custom_call.1} parent=1 // loop_header
      %s19 = sphi 0, %s23
      %p20 = scmp.ge.s32.totalorder %s19, 4
      %s29 = sphi 0, %s31
      %s32 = sphi 0, %s29
      %s33 = sphi 0, %s32
      %s49 = sphi 0, %s33
      %s55 = sphi 0, %s57
      %s58 = sphi 0, %s55
      %s59 = sphi 0, %s58
      %s75 = sphi 0, %s59
      %s79 = sphi 0, %s79
      %s81 = sphi 0, %s79
      %s82 = sphi 0, %s81
      %s96 = sphi 0, %s82
      %s100 = sphi 0, %s100
      %s102 = sphi 0, %s100
      %s103 = sphi 0, %s102
      %s117 = sphi 0, %s103
      %s121 = sphi 0, %s121
      %s123 = sphi 0, %s121
      %s124 = sphi 0, %s123
      %s138 = sphi 0, %s124
      %s142 = sphi 0, %s142
      %s144 = sphi 0, %s142
      %s145 = sphi 0, %s144
      %s159 = sphi 0, %s145
      %s163 = sphi 0, %s163
      %s165 = sphi 0, %s163
      %s166 = sphi 0, %s165
      %s180 = sphi 0, %s166
      %s184 = sphi 0, %s184
      %s186 = sphi 0, %s184
      %s187 = sphi 0, %s186
      %s201 = sphi 0, %s187
      %s207 = sphi 0, %s209
      %s210 = sphi 0, %s207
      %s211 = sphi 0, %s210
      %s227 = sphi 0, %s211
    $region4: #{tpu_custom_call.1} parent=1 // loop_header_branch
      %22 = sbr.rel (%p20) target = $region8
    $region5: #{tpu_custom_call.1} parent=1 // loop_body
      %s24 = ssub.s32 %s19, 1
      %s25 = ssub.s32 %s19, 2
      %s26 = sadd.s32 %s19, 1
      %s27 = ssub.s32 %s19, %s26
      %p28 = scmp.eq.s32.totalorder %s27, 0
      %s30 = sadd.s32 %s29, 1
      %s31 = scalar_select %p28, %s29, %s30
      %p34 = pneg %p28
      %p35 = scmp.eq.s32.totalorder %s19, 1
      %p36 = por %p34, %p35
      %p37 = scmp.ne.s32.totalorder %s29, %s32
      %p38 = scmp.eq.s32.totalorder %s19, 0
      %p39 = por %p37, %p38
      %p40 = scmp.ne.s32.totalorder %s29, %s32
      %p41 = scmp.eq.s32.totalorder %s24, 1
      %p42 = por %p40, %p41
      %p43 = scmp.ne.s32.totalorder %s32, %s33
      %p44 = scmp.eq.s32.totalorder %s24, 0
      %p45 = por %p43, %p44
      %p46 = scmp.ne.s32.totalorder %s32, %s33
      %p47 = scmp.eq.s32.totalorder %s25, 1
      %p48 = por %p46, %p47
      %p50 = scmp.ne.s32.totalorder %s33, %s49
      %p51 = scmp.eq.s32.totalorder %s25, 0
      %p52 = por %p50, %p51
      %s53 = ssub.s32 %s19, %s26
      %p54 = scmp.eq.s32.totalorder %s53, 0
      %s56 = sadd.s32 %s55, 1
      %s57 = scalar_select %p54, %s55, %s56
      %p60 = pneg %p54
      %p61 = scmp.eq.s32.totalorder %s19, 1
      %p62 = por %p60, %p61
      %p63 = scmp.ne.s32.totalorder %s55, %s58
      %p64 = scmp.eq.s32.totalorder %s19, 0
      %p65 = por %p63, %p64
      %p66 = scmp.ne.s32.totalorder %s55, %s58
      %p67 = scmp.eq.s32.totalorder %s24, 1
      %p68 = por %p66, %p67
      %p69 = scmp.ne.s32.totalorder %s58, %s59
      %p70 = scmp.eq.s32.totalorder %s24, 0
      %p71 = por %p69, %p70
      %p72 = scmp.ne.s32.totalorder %s58, %s59
      %p73 = scmp.eq.s32.totalorder %s25, 1
      %p74 = por %p72, %p73
      %p76 = scmp.ne.s32.totalorder %s59, %s75
      %p77 = scmp.eq.s32.totalorder %s25, 0
      %p78 = por %p76, %p77
      %s80 = sadd.s32 %s79, 1
      %p83 = scmp.eq.s32.totalorder %s19, 1
      %p84 = scmp.ne.s32.totalorder %s79, %s81
      %p85 = scmp.eq.s32.totalorder %s19, 0
      %p86 = por %p84, %p85
      %p87 = scmp.ne.s32.totalorder %s79, %s81
      %p88 = scmp.eq.s32.totalorder %s24, 1
      %p89 = por %p87, %p88
      %p90 = scmp.ne.s32.totalorder %s81, %s82
      %p91 = scmp.eq.s32.totalorder %s24, 0
      %p92 = por %p90, %p91
      %p93 = scmp.ne.s32.totalorder %s81, %s82
      %p94 = scmp.eq.s32.totalorder %s25, 1
      %p95 = por %p93, %p94
      %p97 = scmp.ne.s32.totalorder %s82, %s96
      %p98 = scmp.eq.s32.totalorder %s25, 0
      %p99 = por %p97, %p98
      %s101 = sadd.s32 %s100, 1
      %p104 = scmp.eq.s32.totalorder %s19, 1
      %p105 = scmp.ne.s32.totalorder %s100, %s102
      %p106 = scmp.eq.s32.totalorder %s19, 0
      %p107 = por %p105, %p106
      %p108 = scmp.ne.s32.totalorder %s100, %s102
      %p109 = scmp.eq.s32.totalorder %s24, 1
      %p110 = por %p108, %p109
      %p111 = scmp.ne.s32.totalorder %s102, %s103
      %p112 = scmp.eq.s32.totalorder %s24, 0
      %p113 = por %p111, %p112
      %p114 = scmp.ne.s32.totalorder %s102, %s103
      %p115 = scmp.eq.s32.totalorder %s25, 1
      %p116 = por %p114, %p115
      %p118 = scmp.ne.s32.totalorder %s103, %s117
      %p119 = scmp.eq.s32.totalorder %s25, 0
      %p120 = por %p118, %p119
      %s122 = sadd.s32 %s121, 1
      %p125 = scmp.eq.s32.totalorder %s19, 1
      %p126 = scmp.ne.s32.totalorder %s121, %s123
      %p127 = scmp.eq.s32.totalorder %s19, 0
      %p128 = por %p126, %p127
      %p129 = scmp.ne.s32.totalorder %s121, %s123
      %p130 = scmp.eq.s32.totalorder %s24, 1
      %p131 = por %p129, %p130
      %p132 = scmp.ne.s32.totalorder %s123, %s124
      %p133 = scmp.eq.s32.totalorder %s24, 0
      %p134 = por %p132, %p133
      %p135 = scmp.ne.s32.totalorder %s123, %s124
      %p136 = scmp.eq.s32.totalorder %s25, 1
      %p137 = por %p135, %p136
      %p139 = scmp.ne.s32.totalorder %s124, %s138
      %p140 = scmp.eq.s32.totalorder %s25, 0
      %p141 = por %p139, %p140
      %s143 = sadd.s32 %s142, 1
      %p146 = scmp.eq.s32.totalorder %s19, 1
      %p147 = scmp.ne.s32.totalorder %s142, %s144
      %p148 = scmp.eq.s32.totalorder %s19, 0
      %p149 = por %p147, %p148
      %p150 = scmp.ne.s32.totalorder %s142, %s144
      %p151 = scmp.eq.s32.totalorder %s24, 1
      %p152 = por %p150, %p151
      %p153 = scmp.ne.s32.totalorder %s144, %s145
      %p154 = scmp.eq.s32.totalorder %s24, 0
      %p155 = por %p153, %p154
      %p156 = scmp.ne.s32.totalorder %s144, %s145
      %p157 = scmp.eq.s32.totalorder %s25, 1
      %p158 = por %p156, %p157
      %p160 = scmp.ne.s32.totalorder %s145, %s159
      %p161 = scmp.eq.s32.totalorder %s25, 0
      %p162 = por %p160, %p161
      %s164 = sadd.s32 %s163, 1
      %p167 = scmp.eq.s32.totalorder %s19, 1
      %p168 = scmp.ne.s32.totalorder %s163, %s165
      %p169 = scmp.eq.s32.totalorder %s19, 0
      %p170 = por %p168, %p169
      %p171 = scmp.ne.s32.totalorder %s163, %s165
      %p172 = scmp.eq.s32.totalorder %s24, 1
      %p173 = por %p171, %p172
      %p174 = scmp.ne.s32.totalorder %s165, %s166
      %p175 = scmp.eq.s32.totalorder %s24, 0
      %p176 = por %p174, %p175
      %p177 = scmp.ne.s32.totalorder %s165, %s166
      %p178 = scmp.eq.s32.totalorder %s25, 1
      %p179 = por %p177, %p178
      %p181 = scmp.ne.s32.totalorder %s166, %s180
      %p182 = scmp.eq.s32.totalorder %s25, 0
      %p183 = por %p181, %p182
      %s185 = sadd.s32 %s184, 1
      %p188 = scmp.eq.s32.totalorder %s19, 1
      %p189 = scmp.ne.s32.totalorder %s184, %s186
      %p190 = scmp.eq.s32.totalorder %s19, 0
      %p191 = por %p189, %p190
      %p192 = scmp.ne.s32.totalorder %s184, %s186
      %p193 = scmp.eq.s32.totalorder %s24, 1
      %p194 = por %p192, %p193
      %p195 = scmp.ne.s32.totalorder %s186, %s187
      %p196 = scmp.eq.s32.totalorder %s24, 0
      %p197 = por %p195, %p196
      %p198 = scmp.ne.s32.totalorder %s186, %s187
      %p199 = scmp.eq.s32.totalorder %s25, 1
      %p200 = por %p198, %p199
      %p202 = scmp.ne.s32.totalorder %s187, %s201
      %p203 = scmp.eq.s32.totalorder %s25, 0
      %p204 = por %p202, %p203
      %s205 = ssub.s32 %s19, %s26
      %p206 = scmp.eq.s32.totalorder %s205, 0
      %s208 = sadd.s32 %s207, 1
      %s209 = scalar_select %p206, %s207, %s208
      %p212 = pneg %p206
      %p213 = scmp.eq.s32.totalorder %s19, 1
      %p214 = por %p212, %p213
      %p215 = scmp.ne.s32.totalorder %s207, %s210
      %p216 = scmp.eq.s32.totalorder %s19, 0
      %p217 = por %p215, %p216
      %p218 = scmp.ne.s32.totalorder %s207, %s210
      %p219 = scmp.eq.s32.totalorder %s24, 1
      %p220 = por %p218, %p219
      %p221 = scmp.ne.s32.totalorder %s210, %s211
      %p222 = scmp.eq.s32.totalorder %s24, 0
      %p223 = por %p221, %p222
      %p224 = scmp.ne.s32.totalorder %s210, %s211
      %p225 = scmp.eq.s32.totalorder %s25, 1
      %p226 = por %p224, %p225
      %p228 = scmp.ne.s32.totalorder %s211, %s227
      %p229 = scmp.eq.s32.totalorder %s25, 0
      %p230 = por %p228, %p229
      %p231 = scmp.le.s32.totalorder 1, %s19
      %p232 = scmp.lt.s32.totalorder %s19, 3
      %p233 = pnand %p231, %p232
      %p234 = pneg %p233
      // Predicated region
      $region9: #{tpu_custom_call.1} parent=5 // pred_check
        _
      $region10: #{tpu_custom_call.1} parent=5 // pred_check_branch
        %236 = sbr.rel (%p233) target = $region12
      $region11: #{tpu_custom_call.1} parent=5 // pred_region
        %s237 = ssub.s32 %s19, 1
        // Predicated region
        $region13: #{tpu_custom_call.1} parent=11 // pred_check
          %p238 = pneg %p92
        $region14: #{tpu_custom_call.1} parent=11 // pred_check_branch
          %240 = sbr.rel (%p238) target = $region16
        $region15: #{tpu_custom_call.1} parent=11 // pred_region
          _
        $region16: #{tpu_custom_call.1} parent=11 // pred_fallthru
          _
        // Predicated region
        $region17: #{tpu_custom_call.1} parent=11 // pred_check
          %p241 = pneg %p113
        $region18: #{tpu_custom_call.1} parent=11 // pred_check_branch
          %243 = sbr.rel (%p241) target = $region20
        $region19: #{tpu_custom_call.1} parent=11 // pred_region
          _
        $region20: #{tpu_custom_call.1} parent=11 // pred_fallthru
          _
        // Predicated region
        $region21: #{tpu_custom_call.1} parent=11 // pred_check
          %p244 = pneg %p134
        $region22: #{tpu_custom_call.1} parent=11 // pred_check_branch
          %246 = sbr.rel (%p244) target = $region24
        $region23: #{tpu_custom_call.1} parent=11 // pred_region
          _
        $region24: #{tpu_custom_call.1} parent=11 // pred_fallthru
          _
        // Predicated region
        $region25: #{tpu_custom_call.1} parent=11 // pred_check
          %p247 = pneg %p155
        $region26: #{tpu_custom_call.1} parent=11 // pred_check_branch
          %249 = sbr.rel (%p247) target = $region28
        $region27: #{tpu_custom_call.1} parent=11 // pred_region
          _
        $region28: #{tpu_custom_call.1} parent=11 // pred_fallthru
          _
        // Predicated region
        $region29: #{tpu_custom_call.1} parent=11 // pred_check
          %p250 = pneg %p176
        $region30: #{tpu_custom_call.1} parent=11 // pred_check_branch
          %252 = sbr.rel (%p250) target = $region32
        $region31: #{tpu_custom_call.1} parent=11 // pred_region
          _
        $region32: #{tpu_custom_call.1} parent=11 // pred_fallthru
          _
        // Predicated region
        $region33: #{tpu_custom_call.1} parent=11 // pred_check
          %p253 = pneg %p197
        $region34: #{tpu_custom_call.1} parent=11 // pred_check_branch
          %255 = sbr.rel (%p253) target = $region36
        $region35: #{tpu_custom_call.1} parent=11 // pred_region
          _
        $region36: #{tpu_custom_call.1} parent=11 // pred_fallthru
          _
      $region12: #{tpu_custom_call.1} parent=5 // pred_fallthru
        _
      %p256 = scmp.lt.s32.totalorder %s19, 2
      // Predicated region
      $region37: #{tpu_custom_call.1} parent=5 // pred_check
        %p257 = pneg %p256
      $region38: #{tpu_custom_call.1} parent=5 // pred_check_branch
        %259 = sbr.rel (%p257) target = $region40
      $region39: #{tpu_custom_call.1} parent=5 // pred_region
        // Predicated region
        $region41: #{tpu_custom_call.1} parent=39 // pred_check
          %p260 = pneg %p39
        $region42: #{tpu_custom_call.1} parent=39 // pred_check_branch
          %262 = sbr.rel (%p260) target = $region44
        $region43: #{tpu_custom_call.1} parent=39 // pred_region
          %s263 = smul.u32 16, %s19
          %p264 = scmp.lt.s32.totalorder %s263, 31
          %s265 = scalar_select %p264, %s263, 31
          %s266 = smul.addr %s265, 4
          %s267 = scalar_lea.vmem %s0, %s266
          %s268 = smul.u32 16, %s19
        $region44: #{tpu_custom_call.1} parent=39 // pred_fallthru
          _
        // Predicated region
        $region45: #{tpu_custom_call.1} parent=39 // pred_check
          %p269 = pneg %p65
        $region46: #{tpu_custom_call.1} parent=39 // pred_check_branch
          %271 = sbr.rel (%p269) target = $region48
        $region47: #{tpu_custom_call.1} parent=39 // pred_region
          %s272 = smul.u32 16, %s19
          %p273 = scmp.lt.s32.totalorder %s272, 31
          %s274 = scalar_select %p273, %s272, 31
          %s275 = smul.addr %s274, 4
          %s276 = scalar_lea.vmem %s1, %s275
          %s277 = smul.u32 16, %s19
        $region48: #{tpu_custom_call.1} parent=39 // pred_fallthru
          _
      $region40: #{tpu_custom_call.1} parent=5 // pred_fallthru
        _
      %p278 = scmp.le.s32.totalorder 1, %s19
      %p279 = scmp.lt.s32.totalorder %s19, 3
      %p280 = pnand %p278, %p279
      %p281 = pneg %p280
      // Predicated region
      $region49: #{tpu_custom_call.1} parent=5 // pred_check
        _
      $region50: #{tpu_custom_call.1} parent=5 // pred_check_branch
        %283 = sbr.rel (%p280) target = $region52
      $region51: #{tpu_custom_call.1} parent=5 // pred_region
        %s284 = ssub.s32 %s19, 1
        %s285 = smul.u32 16, %s24
        %p286 = scmp.lt.s32.totalorder %s285, 31
        %s287 = scalar_select %p286, %s285, 31
        %s288 = smul.addr %s287, 4
        %s289 = scalar_lea.vmem %s0, %s288
        %p290 = pneg %p45
        %p291 = pneg %p42
        %s292 = smul.u32 16, %s24
        %p293 = scmp.lt.s32.totalorder %s292, 31
        %s294 = scalar_select %p293, %s292, 31
        %s295 = smul.addr %s294, 4
        %s296 = scalar_lea.vmem %s1, %s295
        %p297 = pneg %p71
        %p298 = pneg %p68
        %p299 = pneg %p92
        %p300 = pneg %p89
        %p301 = pneg %p113
        %p302 = pneg %p110
        %p303 = pneg %p134
        %p304 = pneg %p131
        %p305 = pneg %p155
        %p306 = pneg %p152
        %p307 = pneg %p176
        %p308 = pneg %p173
        %p309 = pneg %p197
        %p310 = pneg %p194
        %p311 = pneg %p223
        %p312 = pneg %p220
        %s313 = sand.u32 %s210, 1
        %s314 = scalar_lea.sflag [#allocation4], %s313
        %s315 = sand.u32 %s210, 1
        %s316 = scalar_lea.vmem [#allocation3], %s315
        %s317 = smul.u32 16, %s24
        %p318 = scmp.lt.s32.totalorder %s317, 31
        %s319 = scalar_select %p318, %s317, 31
        %s320 = smul.addr %s319, 4
        %s321 = scalar_lea.vmem %s0, %s320
        %s322 = smul.u32 16, %s24
        %s323 = smul.u32 16, %s24
        %p324 = scmp.lt.s32.totalorder %s323, 31
        %s325 = scalar_select %p324, %s323, 31
        %s326 = smul.addr %s325, 4
        %s327 = scalar_lea.vmem %s1, %s326
        %s328 = smul.u32 16, %s24
        %v330 = vld [vmem:[%s321] sm:$0xf]
        %v331 = vld [vmem:[%s321 + $0x4] sm:$0xf]
        %v332 = vld [vmem:[%s321 + $0x8] sm:$0xf]
        %v333 = vld [vmem:[%s321 + $0xc] sm:$0xf]
        %v334 = vld [vmem:[%s321 + $0x10] sm:$0xf]
        %v335 = vld [vmem:[%s321 + $0x14] sm:$0xf]
        %v336 = vld [vmem:[%s321 + $0x18] sm:$0xf]
        %v337 = vld [vmem:[%s321 + $0x1c] sm:$0xf]
        %v338 = vld [vmem:[%s321 + $0x20] sm:$0xf]
        %v339 = vld [vmem:[%s321 + $0x24] sm:$0xf]
        %v340 = vld [vmem:[%s321 + $0x28] sm:$0xf]
        %v341 = vld [vmem:[%s321 + $0x2c] sm:$0xf]
        %v342 = vld [vmem:[%s321 + $0x30] sm:$0xf]
        %v343 = vld [vmem:[%s321 + $0x34] sm:$0xf]
        %v344 = vld [vmem:[%s321 + $0x38] sm:$0xf]
        %v345 = vld [vmem:[%s321 + $0x3c] sm:$0xf]
        %v346 = vld [vmem:[%s327] sm:$0xf]
        %v347 = vld [vmem:[%s327 + $0x4] sm:$0xf]
        %v348 = vld [vmem:[%s327 + $0x8] sm:$0xf]
        %v349 = vld [vmem:[%s327 + $0xc] sm:$0xf]
        %v350 = vld [vmem:[%s327 + $0x10] sm:$0xf]
        %v351 = vld [vmem:[%s327 + $0x14] sm:$0xf]
        %v352 = vld [vmem:[%s327 + $0x18] sm:$0xf]
        %v353 = vld [vmem:[%s327 + $0x1c] sm:$0xf]
        %v354 = vld [vmem:[%s327 + $0x20] sm:$0xf]
        %v355 = vld [vmem:[%s327 + $0x24] sm:$0xf]
        %v356 = vld [vmem:[%s327 + $0x28] sm:$0xf]
        %v357 = vld [vmem:[%s327 + $0x2c] sm:$0xf]
        %v358 = vld [vmem:[%s327 + $0x30] sm:$0xf]
        %v359 = vld [vmem:[%s327 + $0x34] sm:$0xf]
        %v360 = vld [vmem:[%s327 + $0x38] sm:$0xf]
        %v361 = vld [vmem:[%s327 + $0x3c] sm:$0xf]
        %v362 = vld [vmem:[%s2] sm:$0xf]
        %v363 = vld [vmem:[%s2 + $0x4] sm:$0xf]
        %v364 = vld [vmem:[%s2 + $0x8] sm:$0xf]
        %v365 = vld [vmem:[%s2 + $0xc] sm:$0xf]
        %v366 = vld [vmem:[%s2 + $0x10] sm:$0xf]
        %v367 = vld [vmem:[%s2 + $0x14] sm:$0xf]
        %v368 = vld [vmem:[%s2 + $0x18] sm:$0xf]
        %v369 = vld [vmem:[%s2 + $0x1c] sm:$0xf]
        %v370 = vld [vmem:[%s3] sm:$0xff]
        %v371 = vld [vmem:[%s3 + $0x8] sm:$0xff]
        %v372 = vld [vmem:[%s3 + $0x10] sm:$0xff]
        %v373 = vld [vmem:[%s3 + $0x18] sm:$0xff]
        %v374 = vld [vmem:[%s3 + $0x20] sm:$0xff]
        %v375 = vld [vmem:[%s3 + $0x28] sm:$0xff]
        %v376 = vld [vmem:[%s3 + $0x30] sm:$0xff]
        %v377 = vld [vmem:[%s3 + $0x38] sm:$0xff]
        %379 = vset.pattern.permute.xlu0 0
        %380 = vperm.xlu0 %379, %v370
        %v381 = vpop.permute.xlu0 %380
        %384 = vset.pattern.permute.xlu0 0
        %385 = vperm.xlu0 %384, %v371
        %v386 = vpop.permute.xlu0 %385
        %389 = vset.pattern.permute.xlu0 0
        %390 = vperm.xlu0 %389, %v372
        %v391 = vpop.permute.xlu0 %390
        %394 = vset.pattern.permute.xlu0 0
        %395 = vperm.xlu0 %394, %v373
        %v396 = vpop.permute.xlu0 %395
        %399 = vset.pattern.permute.xlu0 0
        %400 = vperm.xlu0 %399, %v374
        %v401 = vpop.permute.xlu0 %400
        %404 = vset.pattern.permute.xlu0 0
        %405 = vperm.xlu0 %404, %v375
        %v406 = vpop.permute.xlu0 %405
        %409 = vset.pattern.permute.xlu0 0
        %410 = vperm.xlu0 %409, %v376
        %v411 = vpop.permute.xlu0 %410
        %414 = vset.pattern.permute.xlu0 0
        %415 = vperm.xlu0 %414, %v377
        %v416 = vpop.permute.xlu0 %415
        %v426 = vunpack.c.l.b16 %v362
        %v427 = vunpack.c.l.b16 %v363
        %v428 = vunpack.c.l.b16 %v364
        %v429 = vunpack.c.l.b16 %v365
        %v430 = vunpack.c.l.b16 %v366
        %v431 = vunpack.c.l.b16 %v367
        %v432 = vunpack.c.l.b16 %v368
        %v433 = vunpack.c.l.b16 %v369
        %v434 = vpack.c.b16 %v427, %v426
        %v435 = vpack.c.b16 %v429, %v428
        %v436 = vpack.c.b16 %v431, %v430
        %v437 = vpack.c.b16 %v433, %v432
        %v454 = vunpack.c.l.b16 %v330
        %v455 = vunpack.c.l.b16 %v331
        %v456 = vunpack.c.l.b16 %v332
        %v457 = vunpack.c.l.b16 %v333
        %v458 = vunpack.c.l.b16 %v334
        %v459 = vunpack.c.l.b16 %v335
        %v460 = vunpack.c.l.b16 %v336
        %v461 = vunpack.c.l.b16 %v337
        %v462 = vunpack.c.l.b16 %v338
        %v463 = vunpack.c.l.b16 %v339
        %v464 = vunpack.c.l.b16 %v340
        %v465 = vunpack.c.l.b16 %v341
        %v466 = vunpack.c.l.b16 %v342
        %v467 = vunpack.c.l.b16 %v343
        %v468 = vunpack.c.l.b16 %v344
        %v469 = vunpack.c.l.b16 %v345
        %v470 = vpack.c.b16 %v455, %v454
        %v471 = vpack.c.b16 %v457, %v456
        %v472 = vpack.c.b16 %v459, %v458
        %v473 = vpack.c.b16 %v461, %v460
        %v474 = vpack.c.b16 %v463, %v462
        %v475 = vpack.c.b16 %v465, %v464
        %v476 = vpack.c.b16 %v467, %v466
        %v477 = vpack.c.b16 %v469, %v468
        %vm478 = vcmask 261120
        %v480 = vsel %vm478, %v434, 0
        %v483 = vsel %vm478, %v435, 0
        %v486 = vsel %vm478, %v436, 0
        %v489 = vsel %vm478, %v437, 0
        %v492 = vsel %vm478, %v470, 0
        %v495 = vsel %vm478, %v471, 0
        %v498 = vsel %vm478, %v472, 0
        %v501 = vsel %vm478, %v473, 0
        %v504 = vsel %vm478, %v474, 0
        %v507 = vsel %vm478, %v475, 0
        %v510 = vsel %vm478, %v476, 0
        %v513 = vsel %vm478, %v477, 0
        %515 = vmatprep.subr.bf16.mxu0 0
        %516 = vmatpush1.bf16.xpose.msra.mxu0 %v492
        %517 = vmatprep.subr.bf16.mxu0 0
        %518 = vmatpush1.bf16.xpose.msra.mxu0 %v495
        %519 = vmatprep.subr.bf16.mxu0 0
        %520 = vmatpush1.bf16.xpose.msra.mxu0 %v498
        %521 = vmatprep.subr.bf16.mxu0 0
        %522 = vmatpush1.bf16.xpose.msra.mxu0 %v501
        %523 = vmatprep.subr.bf16.mxu0 0
        %524 = vmatpush1.bf16.xpose.msra.mxu0 %v504
        %525 = vmatprep.subr.bf16.mxu0 0
        %526 = vmatpush1.bf16.xpose.msra.mxu0 %v507
        %527 = vmatprep.subr.bf16.mxu0 0
        %528 = vmatpush1.bf16.xpose.msra.mxu0 %v510
        %529 = vmatprep.subr.bf16.mxu0 0
        %530 = vmatpush1.bf16.xpose.msra.mxu0 %v513
        %531 = vmatprep.subr.bf16.mxu0 0
        %532 = vmatpush1.bf16.xpose.msra.mxu0 0
        %533 = vmatprep.subr.bf16.mxu0 0
        %534 = vmatpush1.bf16.xpose.msra.mxu0 0
        %535 = vmatprep.subr.bf16.mxu0 0
        %536 = vmatpush1.bf16.xpose.msra.mxu0 0
        %537 = vmatprep.subr.bf16.mxu0 0
        %538 = vmatpush1.bf16.xpose.msra.mxu0 0
        %539 = vmatprep.subr.bf16.mxu0 0
        %540 = vmatpush1.bf16.xpose.msra.mxu0 0
        %541 = vmatprep.subr.bf16.mxu0 0
        %542 = vmatpush1.bf16.xpose.msra.mxu0 0
        %543 = vmatprep.subr.bf16.mxu0 0
        %544 = vmatpush1.bf16.xpose.msra.mxu0 0
        %545 = vmatprep.subr.bf16.mxu0 0
        %546 = vmatpush1.bf16.xpose.msra.mxu0 0
        %547 = vmatprep.mubr.bf16.mxu0 0
        %548 = vmatmul.mubr.bf16.gmra.mrb[0].mxu0 %v480
        %v549 = vpop.f32.mrb[0].mxu0
        %v550 = vadd.f32 %v381, %v549
        %v551 = vpop.f32.mrb[0].mxu0
        %v552 = vpop.f32.mrb[0].mxu0
        %v553 = vadd.f32 %v386, %v552
        %v554 = vpop.f32.mrb[0].mxu0
        %555 = vmatprep.mubr.bf16.mxu0 0
        %556 = vmatmul.mubr.bf16.gmra.mrb[0].mxu0 %v483
        %v557 = vpop.f32.mrb[0].mxu0
        %v558 = vadd.f32 %v391, %v557
        %v559 = vpop.f32.mrb[0].mxu0
        %v560 = vpop.f32.mrb[0].mxu0
        %v561 = vadd.f32 %v396, %v560
        %v562 = vpop.f32.mrb[0].mxu0
        %563 = vmatprep.mubr.bf16.mxu0 0
        %564 = vmatmul.mubr.bf16.gmra.mrb[0].mxu0 %v486
        %v565 = vpop.f32.mrb[0].mxu0
        %v566 = vadd.f32 %v401, %v565
        %v567 = vpop.f32.mrb[0].mxu0
        %v568 = vpop.f32.mrb[0].mxu0
        %v569 = vadd.f32 %v406, %v568
        %v570 = vpop.f32.mrb[0].mxu0
        %571 = vmatprep.mubr.bf16.mxu0 0
        %572 = vmatmul.mubr.bf16.gmra.mrb[0].mxu0 %v489
        %v573 = vpop.f32.mrb[0].mxu0
        %v574 = vadd.f32 %v411, %v573
        %v575 = vpop.f32.mrb[0].mxu0
        %v576 = vpop.f32.mrb[0].mxu0
        %v577 = vadd.f32 %v416, %v576
        %v578 = vpop.f32.mrb[0].mxu0
        %579 = vdwg.mxu0
        %v580 = vmax.f32 %v550, 0.0
        %v581 = vmax.f32 %v553, 0.0
        %v582 = vmax.f32 %v558, 0.0
        %v583 = vmax.f32 %v561, 0.0
        %v584 = vmax.f32 %v566, 0.0
        %v585 = vmax.f32 %v569, 0.0
        %v586 = vmax.f32 %v574, 0.0
        %v587 = vmax.f32 %v577, 0.0
        %v588 = vld [vmem:[%s4] sm:$0xf]
        %v589 = vld [vmem:[%s4 + $0x4] sm:$0xf]
        %v590 = vld [vmem:[%s4 + $0x8] sm:$0xf]
        %v591 = vld [vmem:[%s4 + $0xc] sm:$0xf]
        %v592 = vld [vmem:[%s4 + $0x10] sm:$0xf]
        %v593 = vld [vmem:[%s4 + $0x14] sm:$0xf]
        %v594 = vld [vmem:[%s4 + $0x18] sm:$0xf]
        %v595 = vld [vmem:[%s4 + $0x1c] sm:$0xf]
        %v596 = vld [vmem:[%s5] sm:$0xff]
        %v597 = vld [vmem:[%s5 + $0x8] sm:$0xff]
        %v598 = vld [vmem:[%s5 + $0x10] sm:$0xff]
        %v599 = vld [vmem:[%s5 + $0x18] sm:$0xff]
        %v600 = vld [vmem:[%s5 + $0x20] sm:$0xff]
        %v601 = vld [vmem:[%s5 + $0x28] sm:$0xff]
        %v602 = vld [vmem:[%s5 + $0x30] sm:$0xff]
        %v603 = vld [vmem:[%s5 + $0x38] sm:$0xff]
        %605 = vset.pattern.permute.xlu0 0
        %606 = vperm.xlu0 %605, %v596
        %v607 = vpop.permute.xlu0 %606
        %610 = vset.pattern.permute.xlu0 0
        %611 = vperm.xlu0 %610, %v597
        %v612 = vpop.permute.xlu0 %611
        %615 = vset.pattern.permute.xlu0 0
        %616 = vperm.xlu0 %615, %v598
        %v617 = vpop.permute.xlu0 %616
        %620 = vset.pattern.permute.xlu0 0
        %621 = vperm.xlu0 %620, %v599
        %v622 = vpop.permute.xlu0 %621
        %625 = vset.pattern.permute.xlu0 0
        %626 = vperm.xlu0 %625, %v600
        %v627 = vpop.permute.xlu0 %626
        %630 = vset.pattern.permute.xlu0 0
        %631 = vperm.xlu0 %630, %v601
        %v632 = vpop.permute.xlu0 %631
        %635 = vset.pattern.permute.xlu0 0
        %636 = vperm.xlu0 %635, %v602
        %v637 = vpop.permute.xlu0 %636
        %640 = vset.pattern.permute.xlu0 0
        %641 = vperm.xlu0 %640, %v603
        %v642 = vpop.permute.xlu0 %641
        %v652 = vunpack.c.l.b16 %v588
        %v653 = vunpack.c.l.b16 %v589
        %v654 = vunpack.c.l.b16 %v590
        %v655 = vunpack.c.l.b16 %v591
        %v656 = vunpack.c.l.b16 %v592
        %v657 = vunpack.c.l.b16 %v593
        %v658 = vunpack.c.l.b16 %v594
        %v659 = vunpack.c.l.b16 %v595
        %v660 = vpack.c.b16 %v653, %v652
        %v661 = vpack.c.b16 %v655, %v654
        %v662 = vpack.c.b16 %v657, %v656
        %v663 = vpack.c.b16 %v659, %v658
        %v680 = vunpack.c.l.b16 %v346
        %v681 = vunpack.c.l.b16 %v347
        %v682 = vunpack.c.l.b16 %v348
        %v683 = vunpack.c.l.b16 %v349
        %v684 = vunpack.c.l.b16 %v350
        %v685 = vunpack.c.l.b16 %v351
        %v686 = vunpack.c.l.b16 %v352
        %v687 = vunpack.c.l.b16 %v353
        %v688 = vunpack.c.l.b16 %v354
        %v689 = vunpack.c.l.b16 %v355
        %v690 = vunpack.c.l.b16 %v356
        %v691 = vunpack.c.l.b16 %v357
        %v692 = vunpack.c.l.b16 %v358
        %v693 = vunpack.c.l.b16 %v359
        %v694 = vunpack.c.l.b16 %v360
        %v695 = vunpack.c.l.b16 %v361
        %v696 = vpack.c.b16 %v681, %v680
        %v697 = vpack.c.b16 %v683, %v682
        %v698 = vpack.c.b16 %v685, %v684
        %v699 = vpack.c.b16 %v687, %v686
        %v700 = vpack.c.b16 %v689, %v688
        %v701 = vpack.c.b16 %v691, %v690
        %v702 = vpack.c.b16 %v693, %v692
        %v703 = vpack.c.b16 %v695, %v694
        %v705 = vsel %vm478, %v660, 0
        %v708 = vsel %vm478, %v661, 0
        %v711 = vsel %vm478, %v662, 0
        %v714 = vsel %vm478, %v663, 0
        %v717 = vsel %vm478, %v696, 0
        %v720 = vsel %vm478, %v697, 0
        %v723 = vsel %vm478, %v698, 0
        %v726 = vsel %vm478, %v699, 0
        %v729 = vsel %vm478, %v700, 0
        %v732 = vsel %vm478, %v701, 0
        %v735 = vsel %vm478, %v702, 0
        %v738 = vsel %vm478, %v703, 0
        %740 = vmatprep.subr.bf16.mxu0 0
        %741 = vmatpush1.bf16.xpose.msra.mxu0 %v717
        %742 = vmatprep.subr.bf16.mxu0 0
        %743 = vmatpush1.bf16.xpose.msra.mxu0 %v720
        %744 = vmatprep.subr.bf16.mxu0 0
        %745 = vmatpush1.bf16.xpose.msra.mxu0 %v723
        %746 = vmatprep.subr.bf16.mxu0 0
        %747 = vmatpush1.bf16.xpose.msra.mxu0 %v726
        %748 = vmatprep.subr.bf16.mxu0 0
        %749 = vmatpush1.bf16.xpose.msra.mxu0 %v729
        %750 = vmatprep.subr.bf16.mxu0 0
        %751 = vmatpush1.bf16.xpose.msra.mxu0 %v732
        %752 = vmatprep.subr.bf16.mxu0 0
        %753 = vmatpush1.bf16.xpose.msra.mxu0 %v735
        %754 = vmatprep.subr.bf16.mxu0 0
        %755 = vmatpush1.bf16.xpose.msra.mxu0 %v738
        %756 = vmatprep.subr.bf16.mxu0 0
        %757 = vmatpush1.bf16.xpose.msra.mxu0 0
        %758 = vmatprep.subr.bf16.mxu0 0
        %759 = vmatpush1.bf16.xpose.msra.mxu0 0
        %760 = vmatprep.subr.bf16.mxu0 0
        %761 = vmatpush1.bf16.xpose.msra.mxu0 0
        %762 = vmatprep.subr.bf16.mxu0 0
        %763 = vmatpush1.bf16.xpose.msra.mxu0 0
        %764 = vmatprep.subr.bf16.mxu0 0
        %765 = vmatpush1.bf16.xpose.msra.mxu0 0
        %766 = vmatprep.subr.bf16.mxu0 0
        %767 = vmatpush1.bf16.xpose.msra.mxu0 0
        %768 = vmatprep.subr.bf16.mxu0 0
        %769 = vmatpush1.bf16.xpose.msra.mxu0 0
        %770 = vmatprep.subr.bf16.mxu0 0
        %771 = vmatpush1.bf16.xpose.msra.mxu0 0
        %772 = vmatprep.mubr.bf16.mxu0 0
        %773 = vmatmul.mubr.bf16.gmra.mrb[0].mxu0 %v705
        %v774 = vpop.f32.mrb[0].mxu0
        %v775 = vadd.f32 %v607, %v774
        %v776 = vpop.f32.mrb[0].mxu0
        %v777 = vpop.f32.mrb[0].mxu0
        %v778 = vadd.f32 %v612, %v777
        %v779 = vpop.f32.mrb[0].mxu0
        %780 = vmatprep.mubr.bf16.mxu0 0
        %781 = vmatmul.mubr.bf16.gmra.mrb[0].mxu0 %v708
        %v782 = vpop.f32.mrb[0].mxu0
        %v783 = vadd.f32 %v617, %v782
        %v784 = vpop.f32.mrb[0].mxu0
        %v785 = vpop.f32.mrb[0].mxu0
        %v786 = vadd.f32 %v622, %v785
        %v787 = vpop.f32.mrb[0].mxu0
        %788 = vmatprep.mubr.bf16.mxu0 0
        %789 = vmatmul.mubr.bf16.gmra.mrb[0].mxu0 %v711
        %v790 = vpop.f32.mrb[0].mxu0
        %v791 = vadd.f32 %v627, %v790
        %v792 = vpop.f32.mrb[0].mxu0
        %v793 = vpop.f32.mrb[0].mxu0
        %v794 = vadd.f32 %v632, %v793
        %v795 = vpop.f32.mrb[0].mxu0
        %796 = vmatprep.mubr.bf16.mxu0 0
        %797 = vmatmul.mubr.bf16.gmra.mrb[0].mxu0 %v714
        %v798 = vpop.f32.mrb[0].mxu0
        %v799 = vadd.f32 %v637, %v798
        %v800 = vpop.f32.mrb[0].mxu0
        %v801 = vpop.f32.mrb[0].mxu0
        %v802 = vadd.f32 %v642, %v801
        %v803 = vpop.f32.mrb[0].mxu0
        %804 = vdwg.mxu0
        %v805 = vmax.f32 %v775, 0.0
        %v806 = vmax.f32 %v778, 0.0
        %v807 = vmax.f32 %v783, 0.0
        %v808 = vmax.f32 %v786, 0.0
        %v809 = vmax.f32 %v791, 0.0
        %v810 = vmax.f32 %v794, 0.0
        %v811 = vmax.f32 %v799, 0.0
        %v812 = vmax.f32 %v802, 0.0
        %v813 = vsub.f32 %v584, %v809
        %v814 = vsub.f32 %v585, %v810
        %v815 = vsub.f32 %v586, %v811
        %v816 = vsub.f32 %v587, %v812
        %v817 = vand.u32 2147483647, %v813
        %v818 = vand.u32 2147483647, %v814
        %v819 = vand.u32 2147483647, %v815
        %v820 = vand.u32 2147483647, %v816
        %v821 = vld [vmem:[%s6] sm:$0xff]
        %v822 = vld [vmem:[%s6 + $0x8] sm:$0xff]
        %v823 = vld [vmem:[%s6 + $0x10] sm:$0xff]
        %v824 = vld [vmem:[%s6 + $0x18] sm:$0xff]
        %v825 = vld [vmem:[%s6 + $0x20] sm:$0xff]
        %v826 = vld [vmem:[%s6 + $0x28] sm:$0xff]
        %v827 = vld [vmem:[%s6 + $0x30] sm:$0xff]
        %v828 = vld [vmem:[%s6 + $0x38] sm:$0xff]
        %v829 = vld [vmem:[%s6 + $0x40] sm:$0xff]
        %v830 = vld [vmem:[%s6 + $0x48] sm:$0xff]
        %v831 = vld [vmem:[%s6 + $0x50] sm:$0xff]
        %v832 = vld [vmem:[%s6 + $0x58] sm:$0xff]
        %834 = vset.pattern.permute.xlu0 0
        %835 = vperm.xlu0 %834, %v821
        %v836 = vpop.permute.xlu0 %835
        %839 = vset.pattern.permute.xlu0 0
        %840 = vperm.xlu0 %839, %v822
        %v841 = vpop.permute.xlu0 %840
        %844 = vset.pattern.permute.xlu0 0
        %845 = vperm.xlu0 %844, %v823
        %v846 = vpop.permute.xlu0 %845
        %849 = vset.pattern.permute.xlu0 0
        %850 = vperm.xlu0 %849, %v824
        %v851 = vpop.permute.xlu0 %850
        %854 = vset.pattern.permute.xlu0 0
        %855 = vperm.xlu0 %854, %v825
        %v856 = vpop.permute.xlu0 %855
        %859 = vset.pattern.permute.xlu0 0
        %860 = vperm.xlu0 %859, %v826
        %v861 = vpop.permute.xlu0 %860
        %864 = vset.pattern.permute.xlu0 0
        %865 = vperm.xlu0 %864, %v827
        %v866 = vpop.permute.xlu0 %865
        %869 = vset.pattern.permute.xlu0 0
        %870 = vperm.xlu0 %869, %v828
        %v871 = vpop.permute.xlu0 %870
        %874 = vset.pattern.permute.xlu0 0
        %875 = vperm.xlu0 %874, %v829
        %v876 = vpop.permute.xlu0 %875
        %879 = vset.pattern.permute.xlu0 0
        %880 = vperm.xlu0 %879, %v830
        %v881 = vpop.permute.xlu0 %880
        %884 = vset.pattern.permute.xlu0 0
        %885 = vperm.xlu0 %884, %v831
        %v886 = vpop.permute.xlu0 %885
        %889 = vset.pattern.permute.xlu0 0
        %890 = vperm.xlu0 %889, %v832
        %v891 = vpop.permute.xlu0 %890
        %v893 = vmul.f32 %v580, %v836
        %v894 = vmul.f32 %v581, %v841
        %v895 = vmul.f32 %v582, %v846
        %v896 = vmul.f32 %v583, %v851
        %v897 = vmul.f32 %v805, %v856
        %v898 = vmul.f32 %v806, %v861
        %v899 = vmul.f32 %v807, %v866
        %v900 = vmul.f32 %v808, %v871
        %v901 = vmul.f32 %v817, %v876
        %v902 = vmul.f32 %v818, %v881
        %v903 = vmul.f32 %v819, %v886
        %v904 = vmul.f32 %v820, %v891
        %v905 = vadd.f32 %v893, %v894
        %v906 = vadd.f32 %v905, %v895
        %v907 = vadd.f32 %v906, %v896
        %v908 = vadd.f32 %v907, %v897
        %v909 = vadd.f32 %v908, %v898
        %v910 = vadd.f32 %v909, %v899
        %v911 = vadd.f32 %v910, %v900
        %v912 = vadd.f32 %v911, %v901
        %v913 = vadd.f32 %v912, %v902
        %v914 = vadd.f32 %v913, %v903
        %v915 = vadd.f32 %v914, %v904
        %v916 = vrot.slane %v915, 4
        %v917 = vadd.f32 %v915, %v916
        %v918 = vrot.slane %v917, 2
        %v919 = vadd.f32 %v917, %v918
        %v920 = vrot.slane %v919, 1
        %v921 = vadd.f32 %v919, %v920
        %v922 = vld [vmem:[#allocation2] sm:$0x1]
        %924 = vset.pattern.permute.xlu0 0
        %925 = vperm.xlu0 %924, %v922
        %v926 = vpop.permute.xlu0 %925
        %v928 = vlaneseq
        %v929 = vshrl.u32 %v928, 7
        %v930 = vsub.s32 0, %v929
        %v931 = vrot.slane %v926, %v930
        %v932 = vadd.f32 %v921, %v931
        %v933 = vxor.u32 %v932, 2147483648
        %v934 = vmul.f32 %v933, 1.442695
        %v935 = vpow.pop %v934
        %v936 = vadd.f32 %v935, 1.0
        %v937 = vrcp.pop %v936
        %v938 = vmul.f32 1.0, %v937
        %939 = vst [vmem:[%s316] sm:$0x1] %v938
        %s940 = sand.u32 %s210, 1
        %s941 = scalar_lea.sflag [#allocation4], %s940
        %s942 = sand.u32 %s210, 1
        %s943 = scalar_lea.vmem [#allocation3], %s942
        // Predicated region
        $region53: #{tpu_custom_call.1} parent=51 // pred_check
          %p944 = pneg %p220
        $region54: #{tpu_custom_call.1} parent=51 // pred_check_branch
          %946 = sbr.rel (%p944) target = $region56
        $region55: #{tpu_custom_call.1} parent=51 // pred_region
          %s948 = ssub.s32 16, 16
          %949 = vsyncadd %s941, %s948
          %s950 = smul.addr %s24, 16
          %s951 = scalar_lea.hbm %s8, %s950
          %s953 = sshll.u32 %s943, 4
          %s954 = int_to_ptr.vmem [resolvable:$true] %s953
          %956 = dma.vmem_to_hbm [thread:$0]  %s954, 16, %s951, %s941
        $region56: #{tpu_custom_call.1} parent=51 // pred_fallthru
          _
      $region52: #{tpu_custom_call.1} parent=5 // pred_fallthru
        _
      %p957 = scmp.le.s32.totalorder 2, %s19
      // Predicated region
      $region57: #{tpu_custom_call.1} parent=5 // pred_check
        %p958 = pneg %p957
      $region58: #{tpu_custom_call.1} parent=5 // pred_check_branch
        %960 = sbr.rel (%p958) target = $region60
      $region59: #{tpu_custom_call.1} parent=5 // pred_region
        %s961 = ssub.s32 %s19, 2
        // Predicated region
        $region61: #{tpu_custom_call.1} parent=59 // pred_check
          %p962 = pneg %p226
        $region62: #{tpu_custom_call.1} parent=59 // pred_check_branch
          %964 = sbr.rel (%p962) target = $region64
        $region63: #{tpu_custom_call.1} parent=59 // pred_region
          %s965 = sand.u32 %s211, 1
          %s966 = scalar_lea.sflag [#allocation4], %s965
          %s967 = sand.u32 %s211, 1
          %s968 = scalar_lea.vmem [#allocation3], %s967
          %969 = dma.done %s966, 16
        $region64: #{tpu_custom_call.1} parent=59 // pred_fallthru
          _
      $region60: #{tpu_custom_call.1} parent=5 // pred_fallthru
        _
    $region6: #{tpu_custom_call.1} parent=1 // loop_footer
      %s23 = sadd.s32 1, %s19
    $region7: #{tpu_custom_call.1} parent=1 // loop_footer_branch
      %18 = sbr.rel target = $region3
    $region8: #{tpu_custom_call.1} parent=1 // loop_exit
      _
    %970 = vsyncpa [#allocation4], 1
    %s971 = scalar_lea.sflag [#allocation4], 1
    %972 = vsyncpa %s971, 1

</llo_original>
